<compile_context>
chip_gen: v5e
topology: v5e:2x2
jax: 0.10.0
libtpu: 0.0.40
codegen_flags: <defaults>
</compile_context>

<pallas_src>
import functools

import jax
import jax.numpy as jnp
from jax.experimental import pallas as pl
from jax.experimental.pallas import tpu as pltpu


# Explicit scoped-VMEM budget: raises v5e's 16 MiB default, stays well inside
# v7x's 64 MiB physical VMEM.
_VMEM_LIMIT_BYTES = 32 * 1024 * 1024


def _pick_spatial_tile(s, cin, cout, itemsize=4):
    """Lane-dense spatial tile.

    Small spatial dims use a full-extent block (exempt from the (8,128)
    divisibility rule).  Larger ones get a multiple of 128 sized so the
    double-buffered input + output tiles fit comfortably in scoped VMEM;
    pl.cdiv on the grid handles the partial last block (pointwise op, so
    partial-block padding cannot contaminate valid lanes).
    """
    if s <= 512:
        return s
    budget = _VMEM_LIMIT_BYTES // 2
    per_lane = 2 * (cin + cout) * itemsize          # in + out, double-buffered
    ts = (budget // per_lane) // 128 * 128
    return int(max(128, min(2048, ts)))


# ----------------------------- Pallas kernel ------------------------------- #

def _conv1x1_kernel(x_ref, w_ref, b_ref, o_ref, *, apply_silu):
    """One spatial tile of a 1x1 conv: o = act(w @ x + b).

    x: (Cin, TS)   w: (Cout, Cin)   b: (Cout, 1)   o: (Cout, TS)
    Spatial (TS) on lanes -> lane-dense stores; Cin is the MXU contraction.
    """
    y = jnp.dot(w_ref[...], x_ref[...], preferred_element_type=jnp.float32)
    y = y + b_ref[...]
    if apply_silu:
        y = y * jax.nn.sigmoid(y)                   # SiLU: EUP sigmoid + VPU mul
    o_ref[...] = y.astype(o_ref.dtype)


def _conv1x1_call(x3, w2, b2, *, apply_silu=False):
    """Pointwise conv over x3 = (B, Cin, S) with weight (Cout, Cin), bias (Cout, 1)."""
    B, cin, S = x3.shape
    cout = w2.shape[0]
    ts = _pick_spatial_tile(S, cin, cout, x3.dtype.itemsize)

    return pl.pallas_call(
        functools.partial(_conv1x1_kernel, apply_silu=apply_silu),
        out_shape=jax.ShapeDtypeStruct((B, cout, S), x3.dtype),
        grid=(B, pl.cdiv(S, ts)),
        in_specs=[
            pl.BlockSpec((None, cin, ts), lambda b, s: (b, 0, s)),
            pl.BlockSpec((cout, cin), lambda b, s: (0, 0)),   # resident weight
            pl.BlockSpec((cout, 1), lambda b, s: (0, 0)),     # resident bias
        ],
        out_specs=pl.BlockSpec((None, cout, ts), lambda b, s: (b, 0, s)),
        compiler_params=pltpu.CompilerParams(
            dimension_semantics=("parallel", "parallel"),
            vmem_limit_bytes=_VMEM_LIMIT_BYTES),
    )(x3, w2, b2)


# ------------------------------ conv wrappers ------------------------------ #

def conv1x1_nchw(x, weight, bias):
    """nn.Conv2d(kernel_size=1) on an NCHW tensor, lane-dense spatial output."""
    B, C, H, W = x.shape
    cout = weight.shape[0]
    out = _conv1x1_call(
        x.reshape(B, C, H * W),                     # free view of NCHW
        weight[:, :, 0, 0],                         # (Cout, Cin)
        bias.reshape(cout, 1),
        apply_silu=False)
    return out.reshape(B, cout, H, W)


def fourier_unit(x, conv_w, conv_b):
    """FourierUnit: rfft2 -> 1x1 conv (+SiLU) on real/imag channels -> irfft2."""
    B, C, H, W = x.shape
    # TODO(synk): rfft2 / irfft2 have no Pallas TPU primitive; kept in plain JAX.
    f = jnp.fft.rfft2(x, s=(H, W), axes=(-2, -1), norm="ortho")  # (B,C,H,Wr) complex
    Wr = f.shape[-1]
    S = H * Wr

    # Block channel layout: [real_0..real_{C-1}, imag_0..imag_{C-1}].
    xs = jnp.concatenate([jnp.real(f), jnp.imag(f)], axis=1).reshape(B, 2 * C, S)

    # PyTorch interleaves (real, imag) along channels (ch = c*2 + ri).  Permute
    # the small (2C,2C) weight / bias once on the host into block order so the
    # kernel needs a single MXU dot per tile.
    perm = jnp.concatenate([jnp.arange(0, 2 * C, 2), jnp.arange(1, 2 * C, 2)])
    w_blk = conv_w[:, :, 0, 0][perm][:, perm]       # (2C, 2C)
    b_blk = conv_b[perm].reshape(2 * C, 1)

    y = _conv1x1_call(xs, w_blk, b_blk, apply_silu=True)   # (B, 2C, S)

    yr = y[:, :C, :]
    yi = y[:, C:, :]
    fc = (yr + 1j * yi).reshape(B, C, H, Wr)
    return jnp.fft.irfft2(fc, s=(H, W), axes=(-2, -1), norm="ortho")


# --------------------------- module forward pass --------------------------- #

def spectral_transform(x, params):
    out = fourier_unit(x, params["fu_w"], params["fu_b"])
    out = conv1x1_nchw(out, params["out_w"], params["out_b"])
    return out


# ------------------------------ pure-JAX ref ------------------------------- #

def spectral_transform_ref(x, params):
    B, C, H, W = x.shape
    f = jnp.fft.rfft2(x, s=(H, W), axes=(-2, -1), norm="ortho")
    wr = f.shape[-1]
    ff = jnp.stack([f.real, f.imag], axis=2).reshape(B, 2 * C, H, wr)
    y = jnp.einsum("oc,bchw->bohw", params["fu_w"][:, :, 0, 0], ff)
    y = y + params["fu_b"][None, :, None, None]
    y = y * jax.nn.sigmoid(y)
    y = y.reshape(B, C, 2, H, wr)
    fc = y[:, :, 0] + 1j * y[:, :, 1]
    xr = jnp.fft.irfft2(fc, s=(H, W), axes=(-2, -1), norm="ortho")
    out = jnp.einsum("oc,bchw->bohw", params["out_w"][:, :, 0, 0], xr)
    out = out + params["out_b"][None, :, None, None]
    return out


# ---------------------------------- main ----------------------------------- #

if __name__ == "__main__":
    B, C, H, W = 2, 4, 16, 16

    key = jax.random.PRNGKey(0)
    k_x, k_w1, k_b1, k_w2, k_b2 = jax.random.split(key, 5)

    x = jax.random.normal(k_x, (B, C, H, W), dtype=jnp.float32)

    # Deterministic synthetic parameters (shapes from nn.Conv2d in __init__).
    params = {
        # FourierUnit.conv: Conv2d(2C -> 2C, kernel_size=1)
        "fu_w": 0.1 * jax.random.normal(k_w1, (2 * C, 2 * C, 1, 1), dtype=jnp.float32),
        "fu_b": 0.1 * jax.random.normal(k_b1, (2 * C,), dtype=jnp.float32),
        # SpectralTransform.out_conv: Conv2d(C -> C, kernel_size=1)
        "out_w": 0.1 * jax.random.normal(k_w2, (C, C, 1, 1), dtype=jnp.float32),
        "out_b": 0.1 * jax.random.normal(k_b2, (C,), dtype=jnp.float32),
    }

    out = jax.block_until_ready(spectral_transform(x, params))
    ref = jax.block_until_ready(spectral_transform_ref(x, params))

    assert out.shape == (B, C, H, W), out.shape
    assert jnp.allclose(out, ref, atol=1e-4, rtol=1e-4), float(jnp.max(jnp.abs(out - ref)))

    print("KERNEL_OK")
</pallas_src>

<mosaic_0001>
module attributes {stable_mosaic.version = 11 : i64} {
  func.func @_conv1x1_kernel(%arg0: i32, %arg1: i32, %arg2: memref<1x8x144xf32, #tpu.memory_space<vmem>>, %arg3: memref<8x8xf32, #tpu.memory_space<vmem>>, %arg4: memref<8x1xf32, #tpu.memory_space<vmem>>, %arg5: memref<1x8x144xf32, #tpu.memory_space<vmem>>) attributes {dimension_semantics = [#tpu.dimension_semantics<parallel>, #tpu.dimension_semantics<parallel>], iteration_bounds = array<i64: 2, 1>, scalar_prefetch = 0 : i64, scratch_operands = 0 : i64, tpu.core_type = #tpu.core_type<tc>, window_params = [{transform_indices = @transform_0, window_bounds = array<i64: 1, 8, 144>}, {pipeline_mode = #tpu.pipeline_mode<synchronous>, transform_indices = @transform_1, window_bounds = array<i64: 8, 8>}, {pipeline_mode = #tpu.pipeline_mode<synchronous>, transform_indices = @transform_2, window_bounds = array<i64: 8, 1>}, {transform_indices = @transform_3, window_bounds = array<i64: 1, 8, 144>}]} {
    %c0 = arith.constant 0 : index
    %c0_0 = arith.constant 0 : index
    %0 = vector.load %arg3[%c0, %c0_0] : memref<8x8xf32, #tpu.memory_space<vmem>>, vector<8x8xf32>
    %c0_1 = arith.constant 0 : index
    %c0_2 = arith.constant 0 : index
    %c0_3 = arith.constant 0 : index
    %1 = vector.load %arg2[%c0_1, %c0_2, %c0_3] : memref<1x8x144xf32, #tpu.memory_space<vmem>>, vector<1x8x144xf32>
    %2 = vector.shape_cast %1 : vector<1x8x144xf32> to vector<8x144xf32>
    %cst = arith.constant dense<0.000000e+00> : vector<8x144xf32>
    %3 = tpu.matmul %0, %2, %cst {dimension_numbers = #tpu.dot_dimension_numbers<[1], [0], [0], [1], [0, 0, 1, 1], [], []>} : vector<8x8xf32>, vector<8x144xf32>, vector<8x144xf32> -> vector<8x144xf32>
    %c0_4 = arith.constant 0 : index
    %c0_5 = arith.constant 0 : index
    %4 = vector.load %arg4[%c0_4, %c0_5] : memref<8x1xf32, #tpu.memory_space<vmem>>, vector<8x1xf32>
    %5 = vector.broadcast %4 : vector<8x1xf32> to vector<8x144xf32>
    %6 = arith.addf %3, %5 : vector<8x144xf32>
    %7 = arith.negf %6 : vector<8x144xf32>
    %8 = math.exp %7 : vector<8x144xf32>
    %cst_6 = arith.constant 1.000000e+00 : f32
    %9 = vector.broadcast %cst_6 : f32 to vector<8x144xf32>
    %10 = arith.addf %9, %8 : vector<8x144xf32>
    %11 = arith.divf %9, %10 : vector<8x144xf32>
    %12 = arith.mulf %6, %11 : vector<8x144xf32>
    %c0_7 = arith.constant 0 : index
    %c0_8 = arith.constant 0 : index
    %c0_9 = arith.constant 0 : index
    %13 = vector.load %arg5[%c0_7, %c0_8, %c0_9] : memref<1x8x144xf32, #tpu.memory_space<vmem>>, vector<1x8x144xf32>
    %14 = vector.shape_cast %13 : vector<1x8x144xf32> to vector<8x144xf32>
    %15 = vector.shape_cast %12 : vector<8x144xf32> to vector<1x8x144xf32>
    tpu.vector_store %arg5[%c0_7, %c0_8, %c0_9], %15 {strides = array<i32>} : memref<1x8x144xf32, #tpu.memory_space<vmem>>, vector<1x8x144xf32>,
    return
  }
  func.func @transform_0(%arg0: i32, %arg1: i32) -> (i32, i32, i32) {
    %c0_i32 = arith.constant 0 : i32
    %c0_i32_0 = arith.constant 0 : i32
    return %arg0, %c0_i32, %arg1 : i32, i32, i32
  }
  func.func @transform_1(%arg0: i32, %arg1: i32) -> (i32, i32) {
    %c0_i32 = arith.constant 0 : i32
    %c0_i32_0 = arith.constant 0 : i32
    %c0_i32_1 = arith.constant 0 : i32
    return %c0_i32, %c0_i32_0 : i32, i32
  }
  func.func @transform_2(%arg0: i32, %arg1: i32) -> (i32, i32) {
    %c0_i32 = arith.constant 0 : i32
    %c0_i32_0 = arith.constant 0 : i32
    %c0_i32_1 = arith.constant 0 : i32
    return %c0_i32, %c0_i32_0 : i32, i32
  }
  func.func @transform_3(%arg0: i32, %arg1: i32) -> (i32, i32, i32) {
    %c0_i32 = arith.constant 0 : i32
    %c0_i32_0 = arith.constant 0 : i32
    return %arg0, %c0_i32, %arg1 : i32, i32, i32
  }
}

</mosaic_0001>

<llo_original>
// kernel: tpu_custom_call.1
$region0: #{tpu_custom_call.1}
  #allocation0 [shape = 'u32[]', space=smem, size = 0x4, offset = 0x4, fixed_abs, tag = 'smem constant byte address 0x4 - core index']
  #allocation1 [shape = 'u32[72,128]{1,0:T(1,128)}', space=vmem, size = 0x9000, scoped, tag = 'internal scratch']
  %s0 = inlined_call_operand.hbm [shape: f32[2,8,144], index: 0, kind: input, shape index: {}]
  %s1 = inlined_call_operand.vmem [shape: f32[8,8], index: 1, kind: input, shape index: {}]
  %s2 = inlined_call_operand.vmem [shape: f32[8,1], index: 2, kind: input, shape index: {}]
  %s3 = inlined_call_operand.hbm [shape: f32[2,8,144], index: 3, kind: output, shape index: {}]
  %s4 = sld [smem:[#allocation0]]
  $region49: #{tpu_custom_call.1} parent=0
    _
  %s6 = ssub.s32 1, %s4
  %s7 = scalar_select 0, %s6, %s4
  $region1: #{tpu_custom_call.1} parent=0
    #allocation2 [shape = 'u8[16384]{0}', space=vmem, size = 0x4000, scoped, tag = 'input window, operand 0']
    #allocation3 [shape = 's32[2]{0}', space=sflag, size = 0x8, scoped, tag = 'scoped memory for tpu_custom_call.1']
    #allocation4 [shape = 's32[2]{0}', space=sflag, size = 0x8, scoped, tag = 'scoped memory for tpu_custom_call.1']
    #allocation5 [shape = 'u8[16384]{0}', space=vmem, size = 0x4000, scoped, tag = 'output window, operand 0']
    %8 = vsyncpa [#allocation3], 0
    %s9 = scalar_lea.sflag [#allocation3], 1
    %10 = vsyncpa %s9, 0
    %11 = vsyncpa [#allocation4], 0
    %s12 = scalar_lea.sflag [#allocation4], 1
    %13 = vsyncpa %s12, 0
    loop: start=0, step=1, limit=4
    $region2: #{tpu_custom_call.1} parent=1 // loop_pre_header
      _
    $region3: #{tpu_custom_call.1} parent=1 // loop_header
      %s15 = sphi 0, %s19
      %p16 = scmp.ge.s32.totalorder %s15, 4
      %s22 = sphi 0, %s34
      %s23 = sphi 0, %s30
      %s24 = sphi 0, %s22
      %s25 = sphi 0, %s23
      %s26 = sphi 0, %s24
      %s27 = sphi 0, %s25
      %s39 = sphi 0, %s41
      %s42 = sphi 0, %s39
      %s43 = sphi 0, %s42
      %s59 = sphi 0, %s43
      %s63 = sphi 0, %s63
      %s65 = sphi 0, %s63
      %s66 = sphi 0, %s65
      %s80 = sphi 0, %s66
      %s84 = sphi 0, %s84
      %s86 = sphi 0, %s84
      %s87 = sphi 0, %s86
      %s101 = sphi 0, %s87
      %s109 = sphi 0, %s111
      %s112 = sphi 0, %s109
      %s113 = sphi 0, %s112
      %s129 = sphi 0, %s113
    $region4: #{tpu_custom_call.1} parent=1 // loop_header_branch
      %18 = sbr.rel (%p16) target = $region8
    $region5: #{tpu_custom_call.1} parent=1 // loop_body
      %s20 = ssub.s32 %s15, 1
      %s21 = ssub.s32 %s15, 2
      %s28 = sadd.s32 1, %s23
      %p29 = scmp.ge.s32.totalorder %s28, 1
      %s30 = scalar_select %p29, 0, %s28
      %s31 = sadd.s32 1, %s22
      %s32 = scalar_select %p29, %s31, %s22
      %p33 = scmp.ge.s32.totalorder %s32, 2
      %s34 = scalar_select %p33, 0, %s32
      %s35 = ssub.s32 %s22, %s34
      %s36 = ssub.s32 %s23, %s30
      %s37 = sor.u32 %s35, %s36
      %p38 = scmp.eq.s32.totalorder %s37, 0
      %s40 = sadd.s32 %s39, 1
      %s41 = scalar_select %p38, %s39, %s40
      %p44 = pneg %p38
      %p45 = scmp.eq.s32.totalorder %s15, 1
      %p46 = por %p44, %p45
      %p47 = scmp.ne.s32.totalorder %s39, %s42
      %p48 = scmp.eq.s32.totalorder %s15, 0
      %p49 = por %p47, %p48
      %p50 = scmp.ne.s32.totalorder %s39, %s42
      %p51 = scmp.eq.s32.totalorder %s20, 1
      %p52 = por %p50, %p51
      %p53 = scmp.ne.s32.totalorder %s42, %s43
      %p54 = scmp.eq.s32.totalorder %s20, 0
      %p55 = por %p53, %p54
      %p56 = scmp.ne.s32.totalorder %s42, %s43
      %p57 = scmp.eq.s32.totalorder %s21, 1
      %p58 = por %p56, %p57
      %p60 = scmp.ne.s32.totalorder %s43, %s59
      %p61 = scmp.eq.s32.totalorder %s21, 0
      %p62 = por %p60, %p61
      %s64 = sadd.s32 %s63, 1
      %p67 = scmp.eq.s32.totalorder %s15, 1
      %p68 = scmp.ne.s32.totalorder %s63, %s65
      %p69 = scmp.eq.s32.totalorder %s15, 0
      %p70 = por %p68, %p69
      %p71 = scmp.ne.s32.totalorder %s63, %s65
      %p72 = scmp.eq.s32.totalorder %s20, 1
      %p73 = por %p71, %p72
      %p74 = scmp.ne.s32.totalorder %s65, %s66
      %p75 = scmp.eq.s32.totalorder %s20, 0
      %p76 = por %p74, %p75
      %p77 = scmp.ne.s32.totalorder %s65, %s66
      %p78 = scmp.eq.s32.totalorder %s21, 1
      %p79 = por %p77, %p78
      %p81 = scmp.ne.s32.totalorder %s66, %s80
      %p82 = scmp.eq.s32.totalorder %s21, 0
      %p83 = por %p81, %p82
      %s85 = sadd.s32 %s84, 1
      %p88 = scmp.eq.s32.totalorder %s15, 1
      %p89 = scmp.ne.s32.totalorder %s84, %s86
      %p90 = scmp.eq.s32.totalorder %s15, 0
      %p91 = por %p89, %p90
      %p92 = scmp.ne.s32.totalorder %s84, %s86
      %p93 = scmp.eq.s32.totalorder %s20, 1
      %p94 = por %p92, %p93
      %p95 = scmp.ne.s32.totalorder %s86, %s87
      %p96 = scmp.eq.s32.totalorder %s20, 0
      %p97 = por %p95, %p96
      %p98 = scmp.ne.s32.totalorder %s86, %s87
      %p99 = scmp.eq.s32.totalorder %s21, 1
      %p100 = por %p98, %p99
      %p102 = scmp.ne.s32.totalorder %s87, %s101
      %p103 = scmp.eq.s32.totalorder %s21, 0
      %p104 = por %p102, %p103
      %s105 = ssub.s32 %s22, %s34
      %s106 = ssub.s32 %s23, %s30
      %s107 = sor.u32 %s105, %s106
      %p108 = scmp.eq.s32.totalorder %s107, 0
      %s110 = sadd.s32 %s109, 1
      %s111 = scalar_select %p108, %s109, %s110
      %p114 = pneg %p108
      %p115 = scmp.eq.s32.totalorder %s15, 1
      %p116 = por %p114, %p115
      %p117 = scmp.ne.s32.totalorder %s109, %s112
      %p118 = scmp.eq.s32.totalorder %s15, 0
      %p119 = por %p117, %p118
      %p120 = scmp.ne.s32.totalorder %s109, %s112
      %p121 = scmp.eq.s32.totalorder %s20, 1
      %p122 = por %p120, %p121
      %p123 = scmp.ne.s32.totalorder %s112, %s113
      %p124 = scmp.eq.s32.totalorder %s20, 0
      %p125 = por %p123, %p124
      %p126 = scmp.ne.s32.totalorder %s112, %s113
      %p127 = scmp.eq.s32.totalorder %s21, 1
      %p128 = por %p126, %p127
      %p130 = scmp.ne.s32.totalorder %s113, %s129
      %p131 = scmp.eq.s32.totalorder %s21, 0
      %p132 = por %p130, %p131
      %p133 = scmp.le.s32.totalorder 1, %s15
      %p134 = scmp.lt.s32.totalorder %s15, 3
      %p135 = pnand %p133, %p134
      %p136 = pneg %p135
      // Predicated region
      $region9: #{tpu_custom_call.1} parent=5 // pred_check
        _
      $region10: #{tpu_custom_call.1} parent=5 // pred_check_branch
        %138 = sbr.rel (%p135) target = $region12
      $region11: #{tpu_custom_call.1} parent=5 // pred_region
        %s139 = ssub.s32 %s15, 1
        // Predicated region
        $region13: #{tpu_custom_call.1} parent=11 // pred_check
          %p140 = pneg %p76
        $region14: #{tpu_custom_call.1} parent=11 // pred_check_branch
          %142 = sbr.rel (%p140) target = $region16
        $region15: #{tpu_custom_call.1} parent=11 // pred_region
          _
        $region16: #{tpu_custom_call.1} parent=11 // pred_fallthru
          _
        // Predicated region
        $region17: #{tpu_custom_call.1} parent=11 // pred_check
          %p143 = pneg %p97
        $region18: #{tpu_custom_call.1} parent=11 // pred_check_branch
          %145 = sbr.rel (%p143) target = $region20
        $region19: #{tpu_custom_call.1} parent=11 // pred_region
          _
        $region20: #{tpu_custom_call.1} parent=11 // pred_fallthru
          _
      $region12: #{tpu_custom_call.1} parent=5 // pred_fallthru
        _
      %p146 = scmp.lt.s32.totalorder %s15, 2
      // Predicated region
      $region21: #{tpu_custom_call.1} parent=5 // pred_check
        %p147 = pneg %p146
      $region22: #{tpu_custom_call.1} parent=5 // pred_check_branch
        %149 = sbr.rel (%p147) target = $region24
      $region23: #{tpu_custom_call.1} parent=5 // pred_region
        // Predicated region
        $region25: #{tpu_custom_call.1} parent=23 // pred_check
          %p150 = pneg %p49
        $region26: #{tpu_custom_call.1} parent=23 // pred_check_branch
          %152 = sbr.rel (%p150) target = $region28
        $region27: #{tpu_custom_call.1} parent=23 // pred_region
          %s153 = sand.u32 %s39, 1
          %s154 = scalar_lea.sflag [#allocation3], %s153
          %s155 = sand.u32 %s39, 1
          %s156 = smul.addr %s155, 16
          %s157 = scalar_lea.vmem [#allocation2], %s156
          %s158 = smul.u32 2, %s23
          %160 = vsyncadd %s154, 0
          %s161 = smul.addr %s22, 2
          %s162 = sadd.s32 %s158, %s161
          %s163 = smul.addr %s162, 8
          %s164 = scalar_lea.hbm %s0, %s163
          %s166 = sshll.u32 %s164, 4
          %s167 = int_to_ptr.hbm [resolvable:$true] %s166
          %s168 = sshll.u32 %s157, 4
          %s169 = int_to_ptr.vmem [resolvable:$true] %s168
          %171 = dma.hbm_to_vmem [thread:$0]  %s167, 256, %s169, %s154
        $region28: #{tpu_custom_call.1} parent=23 // pred_fallthru
          _
      $region24: #{tpu_custom_call.1} parent=5 // pred_fallthru
        _
      %p172 = scmp.le.s32.totalorder 1, %s15
      %p173 = scmp.lt.s32.totalorder %s15, 3
      %p174 = pnand %p172, %p173
      %p175 = pneg %p174
      // Predicated region
      $region29: #{tpu_custom_call.1} parent=5 // pred_check
        _
      $region30: #{tpu_custom_call.1} parent=5 // pred_check_branch
        %177 = sbr.rel (%p174) target = $region32
      $region31: #{tpu_custom_call.1} parent=5 // pred_region
        %s178 = ssub.s32 %s15, 1
        %s179 = sand.u32 %s42, 1
        %s180 = scalar_lea.sflag [#allocation3], %s179
        %s181 = sand.u32 %s42, 1
        %s182 = smul.addr %s181, 16
        %s183 = scalar_lea.vmem [#allocation2], %s182
        // Predicated region
        $region33: #{tpu_custom_call.1} parent=31 // pred_check
          %p184 = pneg %p55
        $region34: #{tpu_custom_call.1} parent=31 // pred_check_branch
          %186 = sbr.rel (%p184) target = $region36
        $region35: #{tpu_custom_call.1} parent=31 // pred_region
          %188 = dma.done %s180, 256
        $region36: #{tpu_custom_call.1} parent=31 // pred_fallthru
          _
        %s189 = sand.u32 %s42, 1
        %s190 = scalar_lea.sflag [#allocation3], %s189
        %s191 = sand.u32 %s42, 1
        %s192 = smul.addr %s191, 16
        %s193 = scalar_lea.vmem [#allocation2], %s192
        %p194 = pneg %p55
        %p195 = pneg %p52
        %p196 = pneg %p76
        %p197 = pneg %p73
        %p198 = pneg %p97
        %p199 = pneg %p94
        %p200 = pneg %p125
        %p201 = pneg %p122
        %s202 = sand.u32 %s112, 1
        %s203 = scalar_lea.sflag [#allocation4], %s202
        %s204 = sand.u32 %s112, 1
        %s205 = smul.addr %s204, 16
        %s206 = scalar_lea.vmem [#allocation5], %s205
        %s207 = smul.u32 2, %s25
        %s208 = smul.u32 2, %s25
        %v209 = vld [vmem:[%s1] sm:$0xff]
        %v210 = vld [vmem:[%s183] sm:$0xff]
        %v211 = vld [vmem:[%s183 + $0x8] sm:$0xff]
        %v212 = vld [vmem:[%s2] sm:$0xff]
        %214 = vset.pattern.permute.xlu0 0
        %215 = vperm.xlu0 %214, %v212
        %v216 = vpop.permute.xlu0 %215
        %vm218 = vcmask 64512
        %v220 = vsel %vm218, %v209, 0
        %222 = vmatpush.msra.mxu0 0.0
        %223 = vmatpush.msra.mxu0 0.0
        %224 = vmatpush.msra.mxu0 0.0
        %225 = vmatpush.msra.mxu0 0.0
        %226 = vmatpush.msra.mxu0 0.0
        %227 = vmatpush.msra.mxu0 0.0
        %228 = vmatpush.msra.mxu0 0.0
        %229 = vmatpush.msra.mxu0 0.0
        %230 = vmatpush.msra.mxu0 0.0
        %231 = vmatpush.msra.mxu0 0.0
        %232 = vmatpush.msra.mxu0 0.0
        %233 = vmatpush.msra.mxu0 0.0
        %234 = vmatpush.msra.mxu0 0.0
        %235 = vmatpush.msra.mxu0 0.0
        %236 = vmatpush.msra.mxu0 0.0
        %237 = vmatpush.msra.mxu0 %v210
        %238 = vmatmul.f32.gmra.mxu0 %v220
        %v239 = vpop.f32.mrf.mxu0
        %v240 = vadd.f32 %v216, %v239
        %241 = vdwg.mxu0
        %242 = vmatpush.msra.mxu0 0.0
        %243 = vmatpush.msra.mxu0 0.0
        %244 = vmatpush.msra.mxu0 0.0
        %245 = vmatpush.msra.mxu0 0.0
        %246 = vmatpush.msra.mxu0 0.0
        %247 = vmatpush.msra.mxu0 0.0
        %248 = vmatpush.msra.mxu0 0.0
        %249 = vmatpush.msra.mxu0 0.0
        %250 = vmatpush.msra.mxu0 0.0
        %251 = vmatpush.msra.mxu0 0.0
        %252 = vmatpush.msra.mxu0 0.0
        %253 = vmatpush.msra.mxu0 0.0
        %254 = vmatpush.msra.mxu0 0.0
        %255 = vmatpush.msra.mxu0 0.0
        %256 = vmatpush.msra.mxu0 0.0
        %257 = vmatpush.msra.mxu0 %v211
        %258 = vmatmul.f32.gmra.mxu0 %v220
        %v259 = vpop.f32.mrf.mxu0
        %v260 = vadd.f32 %v216, %v259
        %261 = vdwg.mxu0
        %v262 = vxor.u32 %v240, 2147483648
        %v263 = vxor.u32 %v260, 2147483648
        %v264 = vmul.f32 %v262, 1.442695
        %v265 = vpow.pop %v264
        %v266 = vmul.f32 %v263, 1.442695
        %v267 = vpow.pop %v266
        %v268 = vadd.f32 %v265, 1.0
        %v269 = vadd.f32 %v267, 1.0
        %v270 = vrcp.pop %v268
        %v271 = vmul.f32 %v268, %v270
        %v272 = vsub.f32 1.0, %v271
        %v273 = vmul.f32 %v270, %v272
        %v274 = vadd.f32 %v270, %v273
        %vm275 = vweird.f32 %v268
        %vm276 = vweird.f32 %v270
        %vm277 = vmor %vm275, %vm276
        %v278 = vsel %vm277, %v270, %v274
        %v279 = vand.u32 2147483647, %v268
        %vm280 = vcmp.eq.f32.partialorder %v279, 8.507059e+37
        %v281 = vand.u32 %v268, 2147483648
        %v282 = vor.u32 1.1754944e-38, %v281
        %v283 = vsel %vm280, %v282, %v278
        %v284 = vmul.f32 1.0, %v283
        %v285 = vrcp.pop %v269
        %v286 = vmul.f32 %v269, %v285
        %v287 = vsub.f32 1.0, %v286
        %v288 = vmul.f32 %v285, %v287
        %v289 = vadd.f32 %v285, %v288
        %vm290 = vweird.f32 %v269
        %vm291 = vweird.f32 %v285
        %vm292 = vmor %vm290, %vm291
        %v293 = vsel %vm292, %v285, %v289
        %v294 = vand.u32 2147483647, %v269
        %vm295 = vcmp.eq.f32.partialorder %v294, 8.507059e+37
        %v296 = vand.u32 %v269, 2147483648
        %v297 = vor.u32 1.1754944e-38, %v296
        %v298 = vsel %vm295, %v297, %v293
        %v299 = vmul.f32 1.0, %v298
        %v300 = vmul.f32 %v240, %v284
        %v301 = vmul.f32 %v260, %v299
        %302 = vst [vmem:[%s206] sm:$0xff] %v300
        %vm303 = vcmask 130048
        %304 = vst.msk [vmem:[%s206 + $0x8] sm:$0xff] %vm303, %v301
        %s305 = sand.u32 %s112, 1
        %s306 = scalar_lea.sflag [#allocation4], %s305
        %s307 = sand.u32 %s112, 1
        %s308 = smul.addr %s307, 16
        %s309 = scalar_lea.vmem [#allocation5], %s308
        // Predicated region
        $region37: #{tpu_custom_call.1} parent=31 // pred_check
          %p310 = pneg %p122
        $region38: #{tpu_custom_call.1} parent=31 // pred_check_branch
          %312 = sbr.rel (%p310) target = $region40
        $region39: #{tpu_custom_call.1} parent=31 // pred_region
          %s313 = smul.u32 2, %s25
          %315 = vsyncadd %s306, 0
          %s316 = smul.addr %s24, 2
          %s317 = sadd.s32 %s313, %s316
          %s318 = smul.addr %s317, 8
          %s319 = scalar_lea.hbm %s3, %s318
          %s321 = sshll.u32 %s309, 4
          %s322 = int_to_ptr.vmem [resolvable:$true] %s321
          %s323 = sshll.u32 %s319, 4
          %s324 = int_to_ptr.hbm [resolvable:$true] %s323
          %326 = dma.vmem_to_hbm [thread:$0]  %s322, 256, %s324, %s306
        $region40: #{tpu_custom_call.1} parent=31 // pred_fallthru
          _
      $region32: #{tpu_custom_call.1} parent=5 // pred_fallthru
        _
      %p327 = scmp.le.s32.totalorder 2, %s15
      // Predicated region
      $region41: #{tpu_custom_call.1} parent=5 // pred_check
        %p328 = pneg %p327
      $region42: #{tpu_custom_call.1} parent=5 // pred_check_branch
        %330 = sbr.rel (%p328) target = $region44
      $region43: #{tpu_custom_call.1} parent=5 // pred_region
        %s331 = ssub.s32 %s15, 2
        // Predicated region
        $region45: #{tpu_custom_call.1} parent=43 // pred_check
          %p332 = pneg %p128
        $region46: #{tpu_custom_call.1} parent=43 // pred_check_branch
          %334 = sbr.rel (%p332) target = $region48
        $region47: #{tpu_custom_call.1} parent=43 // pred_region
          %s335 = sand.u32 %s113, 1
          %s336 = scalar_lea.sflag [#allocation4], %s335
          %s337 = sand.u32 %s113, 1
          %s338 = smul.addr %s337, 16
          %s339 = scalar_lea.vmem [#allocation5], %s338
          %341 = dma.done %s336, 256
        $region48: #{tpu_custom_call.1} parent=43 // pred_fallthru
          _
      $region44: #{tpu_custom_call.1} parent=5 // pred_fallthru
        _
    $region6: #{tpu_custom_call.1} parent=1 // loop_footer
      %s19 = sadd.s32 1, %s15
    $region7: #{tpu_custom_call.1} parent=1 // loop_footer_branch
      %14 = sbr.rel target = $region3
    $region8: #{tpu_custom_call.1} parent=1 // loop_exit
      _
    %342 = vsyncpa [#allocation3], 1
    %s343 = scalar_lea.sflag [#allocation3], 1
    %344 = vsyncpa %s343, 1
    %345 = vsyncpa [#allocation4], 1
    %s346 = scalar_lea.sflag [#allocation4], 1
    %347 = vsyncpa %s346, 1

</llo_original>
